<compile_context>
chip_gen: v5e
topology: v5e:2x2
jax: 0.10.0
libtpu: 0.0.40
codegen_flags: <defaults>
</compile_context>

<pallas_src>
import jax
import jax.numpy as jnp
import numpy as np
from jax import lax
from jax.experimental import pallas as pl
from jax.experimental.pallas import tpu as pltpu


def _ce_kernel(x_ref, tgt_ref, out_ref, acc_ref):
    """One (C, TILE_R, 128) token tile of the streamed cross-entropy reduction."""
    # x_ref   : (C, R, 128) logits tile in the input dtype (pipelined from HBM)
    # tgt_ref : (1, R, 128) int32 per-token target class id (-1 => padded token)
    # out_ref : (1, 1)      f32 partial loss sum for this parallel split (SMEM)
    # acc_ref : (8, 128)    f32 running vreg-shaped partial sums (VMEM scratch)
    s = pl.program_id(1)
    C, R, L = x_ref.shape

    @pl.when(s == 0)
    def _init():
        acc_ref[...] = jnp.zeros_like(acc_ref)

    x = x_ref[...].astype(jnp.float32)              # (C, R, 128)
    tgt = tgt_ref[0]                                # (R, 128) int32

    # Numerically-stable log-sum-exp over the class axis.  The class axis is the
    # *leading* dim of the tile, so max/sum lower to plain VALU loops (no XLU
    # cross-sublane reduce) and every vreg is fully packed even for tiny C.
    m = jnp.max(x, axis=0)                          # (R, 128)
    e = jnp.exp(x - m[None])                        # (C, R, 128) -> EUP slot
    lse = jnp.log(jnp.sum(e, axis=0))               # (R, 128)

    # Target-logit select: compare a class iota with the per-token target id.
    cls = lax.broadcasted_iota(jnp.int32, (C, R, L), 0)
    x_t = jnp.sum(jnp.where(cls == tgt[None], x, 0.0), axis=0)   # (R, 128)

    # valid == 0 for padded tokens / out-of-range ids; x_t is also 0 there, so
    # loss = valid*(m+lse) - x_t stays exact (the coupling the review flagged).
    valid = jnp.logical_and(tgt >= 0, tgt < C).astype(jnp.float32)
    loss = valid * (m + lse) - x_t                  # (R, 128) = -log_p[target]

    # Fold the R sublane-rows into a single (8, 128) vreg accumulator (pure VALU
    # adds), so the scratch stays 4 KiB no matter how large the tile is.
    acc_ref[...] += jnp.sum(loss.reshape(R // 8, 8, L), axis=0)

    @pl.when(s == pl.num_programs(1) - 1)
    def _finalize():
        out_ref[0, 0] = jnp.sum(acc_ref[...])


def _generation_budgets():
    """(vmem_limit_bytes, raw_tile_cap_bytes), sized per TPU generation."""
    try:
        cap = int(pltpu.get_tpu_info().vmem_capacity_bytes)
    except Exception:
        cap = 64 * 1024 * 1024                      # conservative (v7x-class)
    if cap <= 64 * 1024 * 1024:                     # v7x: 64 MiB per TensorCore
        return 48 * 1024 * 1024, 4 * 1024 * 1024
    return 64 * 1024 * 1024, 8 * 1024 * 1024        # v5e / v6e: 128 MiB physical


def _pick_tile_tokens(C, N, itemsize, vmem_limit, raw_cap):
    # Per-token VMEM cost of one grid step:
    #   2 x raw logits (double-buffered pipeline)          = 2*C*itemsize
    #   ~3 x f32 (C,) temporaries (upcast x, e, select)    = 3*C*4
    #   targets (double-buffered int32) + f32 loss planes  ~= 12
    per_tok = 2 * C * itemsize + 3 * C * 4 + 12
    t = int(0.7 * vmem_limit) // per_tok
    t = min(t, raw_cap // max(1, C * itemsize))      # keep raw tile in 2-8 MiB band
    t = max(1024, (t // 1024) * 1024)                # TILE_R multiple of 8 sublanes
    n_round = ((N + 1023) // 1024) * 1024
    return min(t, n_round)


def cross_entropy_loss(inputs, targets, *, tile_tokens=None):
    """inputs: (B, C, *spatial) logits; targets: (B,) int class ids.

    Equivalent to torchFewShot CrossEntropyLoss.forward(inputs, targets, sim=False)
    for a single (non-list) input tensor.
    """
    B, C = int(inputs.shape[0]), int(inputs.shape[1])
    S = 1
    for d in inputs.shape[2:]:
        S *= int(d)
    N = B * S

    # Token-major, lane-dense layout: (B, C, S) -> (C, B*S).  The transpose is
    # wrapper-side layout plumbing (one extra XLA pass) that the review asked
    # for; it makes the streamed axis lane-dense even when S is tiny.
    x = jnp.transpose(inputs.reshape(B, C, S), (1, 0, 2)).reshape(C, N)
    tgt_tok = jnp.repeat(targets.astype(jnp.int32), S)            # (N,)

    itemsize = jnp.dtype(inputs.dtype).itemsize
    vmem_limit, raw_cap = _generation_budgets()
    if tile_tokens is None:
        tile_tokens = _pick_tile_tokens(C, N, itemsize, vmem_limit, raw_cap)
    tile_tokens = max(1024, ((int(tile_tokens) + 1023) // 1024) * 1024)

    num_tiles = -(-N // tile_tokens)
    num_splits = 2 if num_tiles >= 2 else 1          # v7x megacore split axis
    num_tiles = -(-num_tiles // num_splits) * num_splits
    n_pad = num_tiles * tile_tokens
    num_s = num_tiles // num_splits

    if n_pad != N:
        # Padded tokens: zero logits + target id -1 => exactly zero contribution.
        x = jnp.pad(x, ((0, 0), (0, n_pad - N)))
        tgt_tok = jnp.pad(tgt_tok, (0, n_pad - N), constant_values=-1)

    r_total = n_pad // 128
    tile_r = tile_tokens // 128
    x3 = x.reshape(C, r_total, 128)
    tgt3 = tgt_tok.reshape(1, r_total, 128)

    out = pl.pallas_call(
        _ce_kernel,
        out_shape=jax.ShapeDtypeStruct((num_splits, 1), jnp.float32),
        grid_spec=pltpu.PrefetchScalarGridSpec(
            num_scalar_prefetch=0,
            grid=(num_splits, num_s),
            in_specs=[
                pl.BlockSpec((C, tile_r, 128), lambda p, s: (0, p * num_s + s, 0)),
                pl.BlockSpec((1, tile_r, 128), lambda p, s: (0, p * num_s + s, 0)),
            ],
            out_specs=pl.BlockSpec(
                (1, 1), lambda p, s: (p, 0),
                memory_space=pltpu.MemorySpace.SMEM),
            scratch_shapes=[pltpu.VMEM((8, 128), jnp.float32)],
        ),
        compiler_params=pltpu.CompilerParams(
            # Leading axis shards token-tiles across TensorCores on v7x; the
            # inner axis accumulates into scratch/output -> "arbitrary".
            dimension_semantics=("parallel", "arbitrary"),
            vmem_limit_bytes=vmem_limit,
        ),
    )(x3, tgt3)

    # Out-of-range target ids contribute 0 loss (documented divergence from
    # PyTorch scatter, which would error); the divisor is still B*S.
    return jnp.sum(out) / jnp.float32(B * S)


def _reference(inputs, targets):
    B, C = inputs.shape[0], inputs.shape[1]
    xr = inputs.reshape(B, C, -1).astype(jnp.float32)
    S = xr.shape[2]
    log_probs = jax.nn.log_softmax(xr, axis=1)
    onehot = jax.nn.one_hot(targets, C, dtype=jnp.float32)[:, :, None]
    return jnp.sum(-onehot * log_probs, axis=(1, 2)).mean() / S


if __name__ == "__main__":
    key = jax.random.PRNGKey(0)
    kx, kt, kx2, kt2, kx3, kt3 = jax.random.split(key, 6)

    # Case 1: module-sized demo (B, C, H, W) = (2, 4, 16, 16), default tiling
    # (single grid step, single split).
    B, C, H, W = 2, 4, 16, 16
    x = jax.random.normal(kx, (B, C, H, W), dtype=jnp.float32)
    targets = jax.random.randint(kt, (B,), 0, C, dtype=jnp.int32)
    loss = jax.block_until_ready(cross_entropy_loss(x, targets))
    ref = _reference(x, targets)
    assert np.allclose(np.asarray(loss), np.asarray(ref), rtol=1e-5, atol=1e-5), (loss, ref)

    # Case 2: bf16 input, odd class count / spatial extent, forced small tile to
    # exercise the 2-way parallel split, multi-step accumulation per split, and
    # padded-token masking (N = 3*29*31 = 2697 -> padded to 4 tiles of 1024).
    B2, C2, H2, W2 = 3, 5, 29, 31
    x2 = jax.random.normal(kx2, (B2, C2, H2, W2), dtype=jnp.bfloat16)
    targets2 = jax.random.randint(kt2, (B2,), 0, C2, dtype=jnp.int32)
    loss2 = jax.block_until_ready(cross_entropy_loss(x2, targets2, tile_tokens=1024))
    ref2 = _reference(x2, targets2)
    assert np.allclose(np.asarray(loss2), np.asarray(ref2), rtol=1e-4, atol=1e-4), (loss2, ref2)

    # Case 3: pure-classification shape (B, C) with no spatial dims (S = 1),
    # exercising the heavily-padded degenerate path.
    B3, C3 = 2, 4
    x3 = jax.random.normal(kx3, (B3, C3), dtype=jnp.float32)
    targets3 = jax.random.randint(kt3, (B3,), 0, C3, dtype=jnp.int32)
    loss3 = jax.block_until_ready(cross_entropy_loss(x3, targets3))
    ref3 = _reference(x3, targets3)
    assert np.allclose(np.asarray(loss3), np.asarray(ref3), rtol=1e-5, atol=1e-5), (loss3, ref3)

    print("KERNEL_OK")
</pallas_src>

<mosaic_0001>
module attributes {stable_mosaic.version = 11 : i64} {
  func.func @_ce_kernel(%arg0: i32, %arg1: i32, %arg2: memref<4x8x128xf32, #tpu.memory_space<vmem>>, %arg3: memref<1x8x128xi32, #tpu.memory_space<vmem>>, %arg4: memref<1x1xf32, #tpu.memory_space<smem>>, %arg5: memref<8x128xf32, #tpu.memory_space<vmem>>) attributes {dimension_semantics = [#tpu.dimension_semantics<parallel>, #tpu.dimension_semantics<arbitrary>], iteration_bounds = array<i64: 1, 1>, scalar_prefetch = 0 : i64, scratch_operands = 1 : i64, tpu.core_type = #tpu.core_type<tc>, window_params = [{transform_indices = @transform_0, window_bounds = array<i64: 4, 8, 128>}, {transform_indices = @transform_1, window_bounds = array<i64: 1, 8, 128>}, {transform_indices = @transform_2, window_bounds = array<i64: 1, 1>}]} {
    %c0_i32 = arith.constant 0 : i32
    %0 = arith.cmpi eq, %arg1, %c0_i32 : i32
    %1 = arith.extui %0 : i1 to i32
    %c0_i32_0 = arith.constant 0 : i32
    %2 = arith.cmpi ne, %1, %c0_i32_0 : i32
    scf.if %2 {
      %cst_17 = arith.constant 0.000000e+00 : f32
      %38 = vector.broadcast %cst_17 : f32 to vector<8x128xf32>
      %c0_18 = arith.constant 0 : index
      %c0_19 = arith.constant 0 : index
      %39 = vector.load %arg5[%c0_18, %c0_19] : memref<8x128xf32, #tpu.memory_space<vmem>>, vector<8x128xf32>
      tpu.vector_store %arg5[%c0_18, %c0_19], %38 {strides = array<i32>} : memref<8x128xf32, #tpu.memory_space<vmem>>, vector<8x128xf32>,
    } else {
    }
    %c0 = arith.constant 0 : index
    %c0_1 = arith.constant 0 : index
    %c0_2 = arith.constant 0 : index
    %3 = vector.load %arg2[%c0, %c0_1, %c0_2] : memref<4x8x128xf32, #tpu.memory_space<vmem>>, vector<4x8x128xf32>
    %c0_3 = arith.constant 0 : index
    %c0_4 = arith.constant 0 : index
    %c0_5 = arith.constant 0 : index
    %4 = vector.load %arg3[%c0_3, %c0_4, %c0_5] : memref<1x8x128xi32, #tpu.memory_space<vmem>>, vector<1x8x128xi32>
    %5 = vector.shape_cast %4 : vector<1x8x128xi32> to vector<8x128xi32>
    %cst = arith.constant dense<0xFF800000> : vector<8x128xf32>
    %6 = vector.multi_reduction <maximumf>, %3, %cst [0] : vector<4x8x128xf32> to vector<8x128xf32>
    %7 = vector.shape_cast %6 : vector<8x128xf32> to vector<1x8x128xf32>
    %8 = vector.broadcast %7 : vector<1x8x128xf32> to vector<4x8x128xf32>
    %9 = arith.subf %3, %8 : vector<4x8x128xf32>
    %10 = math.exp %9 : vector<4x8x128xf32>
    %cst_6 = arith.constant dense<0.000000e+00> : vector<8x128xf32>
    %11 = vector.multi_reduction <add>, %10, %cst_6 [0] : vector<4x8x128xf32> to vector<8x128xf32>
    %12 = math.log %11 : vector<8x128xf32>
    %13 = tpu.iota {dimensions = array<i32: 0>} : vector<4x8x128xi32>
    %14 = vector.shape_cast %5 : vector<8x128xi32> to vector<1x8x128xi32>
    %15 = vector.broadcast %14 : vector<1x8x128xi32> to vector<4x8x128xi32>
    %16 = arith.cmpi eq, %13, %15 : vector<4x8x128xi32>
    %cst_7 = arith.constant 0.000000e+00 : f32
    %17 = vector.broadcast %cst_7 : f32 to vector<4x8x128xf32>
    %18 = arith.select %16, %3, %17 : vector<4x8x128xi1>, vector<4x8x128xf32>
    %cst_8 = arith.constant dense<0.000000e+00> : vector<8x128xf32>
    %19 = vector.multi_reduction <add>, %18, %cst_8 [0] : vector<4x8x128xf32> to vector<8x128xf32>
    %c0_i32_9 = arith.constant 0 : i32
    %20 = vector.broadcast %c0_i32_9 : i32 to vector<8x128xi32>
    %21 = arith.cmpi sge, %5, %20 : vector<8x128xi32>
    %c4_i32 = arith.constant 4 : i32
    %22 = vector.broadcast %c4_i32 : i32 to vector<8x128xi32>
    %23 = arith.cmpi slt, %5, %22 : vector<8x128xi32>
    %24 = arith.andi %21, %23 : vector<8x128xi1>
    %25 = arith.extui %24 : vector<8x128xi1> to vector<8x128xi32>
    %26 = arith.sitofp %25 : vector<8x128xi32> to vector<8x128xf32>
    %27 = arith.addf %6, %12 : vector<8x128xf32>
    %28 = arith.mulf %26, %27 : vector<8x128xf32>
    %29 = arith.subf %28, %19 : vector<8x128xf32>
    %c0_10 = arith.constant 0 : index
    %c0_11 = arith.constant 0 : index
    %30 = vector.load %arg5[%c0_10, %c0_11] : memref<8x128xf32, #tpu.memory_space<vmem>>, vector<8x128xf32>
    %31 = vector.shape_cast %29 : vector<8x128xf32> to vector<1x8x128xf32>
    %cst_12 = arith.constant dense<0.000000e+00> : vector<8x128xf32>
    %32 = vector.multi_reduction <add>, %31, %cst_12 [0] : vector<1x8x128xf32> to vector<8x128xf32>
    %33 = arith.addf %30, %32 : vector<8x128xf32>
    %c0_13 = arith.constant 0 : index
    %c0_14 = arith.constant 0 : index
    %34 = vector.load %arg5[%c0_13, %c0_14] : memref<8x128xf32, #tpu.memory_space<vmem>>, vector<8x128xf32>
    tpu.vector_store %arg5[%c0_13, %c0_14], %33 {strides = array<i32>} : memref<8x128xf32, #tpu.memory_space<vmem>>, vector<8x128xf32>,
    %c0_i32_15 = arith.constant 0 : i32
    %35 = arith.cmpi eq, %arg1, %c0_i32_15 : i32
    %36 = arith.extui %35 : i1 to i32
    %c0_i32_16 = arith.constant 0 : i32
    %37 = arith.cmpi ne, %36, %c0_i32_16 : i32
    scf.if %37 {
      %c0_17 = arith.constant 0 : index
      %c0_18 = arith.constant 0 : index
      %38 = vector.load %arg5[%c0_17, %c0_18] : memref<8x128xf32, #tpu.memory_space<vmem>>, vector<8x128xf32>
      %39 = vector.shape_cast %38 : vector<8x128xf32> to vector<1x8x128xf32>
      %cst_19 = arith.constant dense<0.000000e+00> : vector<1xf32>
      %40 = vector.multi_reduction <add>, %39, %cst_19 [1, 2] : vector<1x8x128xf32> to vector<1xf32>
      %41 = vector.shape_cast %40 : vector<1xf32> to vector<1x1x1xf32>
      %42 = vector.extract %41[0, 0, 0] : f32 from vector<1x1x1xf32>
      %c0_20 = arith.constant 0 : index
      %c0_21 = arith.constant 0 : index
      %43 = memref.load %arg4[%c0_20, %c0_21] : memref<1x1xf32, #tpu.memory_space<smem>>
      memref.store %42, %arg4[%c0_20, %c0_21] : memref<1x1xf32, #tpu.memory_space<smem>>
    } else {
    }
    return
  }
  func.func @transform_0(%arg0: i32, %arg1: i32) -> (i32, i32, i32) {
    %c1_i32 = arith.constant 1 : i32
    %0 = arith.muli %arg0, %c1_i32 : i32
    %1 = arith.addi %0, %arg1 : i32
    %c0_i32 = arith.constant 0 : i32
    %c0_i32_0 = arith.constant 0 : i32
    %c0_i32_1 = arith.constant 0 : i32
    return %c0_i32, %1, %c0_i32_0 : i32, i32, i32
  }
  func.func @transform_1(%arg0: i32, %arg1: i32) -> (i32, i32, i32) {
    %c1_i32 = arith.constant 1 : i32
    %0 = arith.muli %arg0, %c1_i32 : i32
    %1 = arith.addi %0, %arg1 : i32
    %c0_i32 = arith.constant 0 : i32
    %c0_i32_0 = arith.constant 0 : i32
    %c0_i32_1 = arith.constant 0 : i32
    return %c0_i32, %1, %c0_i32_0 : i32, i32, i32
  }
  func.func @transform_2(%arg0: i32, %arg1: i32) -> (i32, i32) {
    %c0_i32 = arith.constant 0 : i32
    %c0_i32_0 = arith.constant 0 : i32
    return %arg0, %c0_i32 : i32, i32
  }
}

</mosaic_0001>

<llo_original>
// kernel: tpu_custom_call.1
$region0: #{tpu_custom_call.1}
  #allocation0 [shape = 'u32[]', space=smem, size = 0x4, offset = 0x4, fixed_abs, tag = 'smem constant byte address 0x4 - core index']
  #allocation1 [shape = 'u32[72,128]{1,0:T(1,128)}', space=vmem, size = 0x9000, scoped, tag = 'internal scratch']
  #allocation2 [shape = 'f32[8,128]{1,0:T(8,128)}', space=vmem, size = 0x1000, scoped, tag = 'scratch operand']
  %s0 = inlined_call_operand.hbm [shape: f32[4,8,128], index: 0, kind: input, shape index: {}]
  %s1 = inlined_call_operand.hbm [shape: s32[1,8,128], index: 1, kind: input, shape index: {}]
  %s2 = inlined_call_operand.hbm [shape: f32[1,1], index: 2, kind: output, shape index: {}]
  %s3 = sld [smem:[#allocation0]]
  $region34: #{tpu_custom_call.1} parent=0
    _
  %s5 = ssub.s32 1, %s3
  %s6 = scalar_select 0, %s5, %s3
  $region1: #{tpu_custom_call.1} parent=0
    #allocation3 [shape = 'u8[16384]{0}', space=vmem, size = 0x4000, scoped, tag = 'input window, operand 0, single buffered']
    #allocation4 [shape = 's32[1]{0}', space=sflag, size = 0x4, scoped, tag = 'scoped memory for tpu_custom_call.1']
    #allocation5 [shape = 's32[1]{0}', space=sflag, size = 0x4, scoped, tag = 'scoped memory for tpu_custom_call.1']
    #allocation6 [shape = 'u8[4096]{0}', space=vmem, size = 0x1000, scoped, tag = 'input window, operand 1, single buffered']
    #allocation7 [shape = 's32[1]{0}', space=sflag, size = 0x4, scoped, tag = 'scoped memory for tpu_custom_call.1']
    #allocation8 [shape = 'u8[512]{0}', space=smem, size = 0x200, scoped, tag = 'output window, operand 0, single buffered']
    %7 = vsyncpa [#allocation4], 0
    %8 = vsyncpa [#allocation7], 0
    %9 = vsyncpa [#allocation5], 0
    // Predicated region
    $region2: #{tpu_custom_call.1} parent=1 // pred_check
      _
    $region3: #{tpu_custom_call.1} parent=1 // pred_check_branch
      %11 = sbr.rel (0) target = $region5
    $region4: #{tpu_custom_call.1} parent=1 // pred_region
      %s12 = sadd.s32 0, 0
      %14 = vsyncadd [#allocation4], 0
      %s15 = smul.addr %s12, 8
      %s16 = scalar_lea.hbm %s0, %s15
      %s17 = sshll.u32 %s16, 4
      %s18 = int_to_ptr.hbm [resolvable:$true] %s17
      %s19 = sshll.u32 [#allocation3], 4
      %s20 = int_to_ptr.vmem [resolvable:$true] %s19
      %25 = dma.hbm_to_vmem [thread:$0]  %s18, 512, %s20, [#allocation4], 128, 128, 8
    $region5: #{tpu_custom_call.1} parent=1 // pred_fallthru
      _
    // Predicated region
    $region6: #{tpu_custom_call.1} parent=1 // pred_check
      _
    $region7: #{tpu_custom_call.1} parent=1 // pred_check_branch
      %27 = sbr.rel (0) target = $region9
    $region8: #{tpu_custom_call.1} parent=1 // pred_region
      %s28 = sadd.s32 0, 0
      %30 = vsyncadd [#allocation7], 0
      %s31 = smul.addr %s28, 8
      %s32 = scalar_lea.hbm %s1, %s31
      %s34 = sshll.u32 %s32, 4
      %s35 = int_to_ptr.hbm [resolvable:$true] %s34
      %s36 = sshll.u32 [#allocation6], 4
      %s37 = int_to_ptr.vmem [resolvable:$true] %s36
      %39 = dma.hbm_to_vmem [thread:$0]  %s35, 128, %s37, [#allocation7]
    $region9: #{tpu_custom_call.1} parent=1 // pred_fallthru
      _
    // Predicated region
    $region10: #{tpu_custom_call.1} parent=1 // pred_check
      _
    $region11: #{tpu_custom_call.1} parent=1 // pred_check_branch
      %41 = sbr.rel (0) target = $region13
    $region12: #{tpu_custom_call.1} parent=1 // pred_region
      %43 = dma.done [#allocation4], 512
    $region13: #{tpu_custom_call.1} parent=1 // pred_fallthru
      _
    // Predicated region
    $region14: #{tpu_custom_call.1} parent=1 // pred_check
      _
    $region15: #{tpu_custom_call.1} parent=1 // pred_check_branch
      %45 = sbr.rel (0) target = $region17
    $region16: #{tpu_custom_call.1} parent=1 // pred_region
      %47 = dma.done [#allocation7], 128
    $region17: #{tpu_custom_call.1} parent=1 // pred_fallthru
      _
    %s48 = sadd.s32 0, 0
    %s49 = sadd.s32 0, 0
    %p50 = scmp.eq.s32.totalorder 0, 0
    // Predicated region
    $region18: #{tpu_custom_call.1} parent=1 // pred_check
      %p51 = pneg %p50
    $region19: #{tpu_custom_call.1} parent=1 // pred_check_branch
      %53 = sbr.rel (%p51) target = $region21
    $region20: #{tpu_custom_call.1} parent=1 // pred_region
      %54 = vst [vmem:[#allocation2] sm:$0xff] 0.0
    $region21: #{tpu_custom_call.1} parent=1 // pred_fallthru
      _
    %v55 = vld [vmem:[#allocation3] sm:$0xff]
    %v56 = vld [vmem:[#allocation3 + $0x8] sm:$0xff]
    %v57 = vld [vmem:[#allocation3 + $0x10] sm:$0xff]
    %v58 = vld [vmem:[#allocation3 + $0x18] sm:$0xff]
    %v59 = vld [vmem:[#allocation6] sm:$0xff]
    %v60 = vmax.f32 %v55, %v56
    %v61 = vmax.f32 %v57, %v58
    %v62 = vmax.f32 %v60, %v61
    %v63 = vsub.f32 %v55, %v62
    %v64 = vsub.f32 %v56, %v62
    %v65 = vsub.f32 %v57, %v62
    %v66 = vsub.f32 %v58, %v62
    %v67 = vmul.f32 %v63, 1.442695
    %v68 = vpow.pop %v67
    %v69 = vmul.f32 %v64, 1.442695
    %v70 = vpow.pop %v69
    %v71 = vmul.f32 %v65, 1.442695
    %v72 = vpow.pop %v71
    %v73 = vmul.f32 %v66, 1.442695
    %v74 = vpow.pop %v73
    %v75 = vadd.f32 %v68, %v70
    %v76 = vadd.f32 %v75, %v72
    %v77 = vadd.f32 %v76, %v74
    %v78 = vlog2.pop %v77
    %v79 = vmul.f32 %v78, 0.6931472
    %vm80 = vcmp.eq.s32.totalorder %v59, 0
    %vm81 = vcmp.eq.s32.totalorder %v59, 1
    %vm82 = vcmp.eq.s32.totalorder %v59, 2
    %vm83 = vcmp.eq.s32.totalorder %v59, 3
    %v84 = vsel %vm80, %v55, 0.0
    %v85 = vsel %vm81, %v56, 0.0
    %v86 = vsel %vm82, %v57, 0.0
    %v87 = vsel %vm83, %v58, 0.0
    %v88 = vadd.f32 %v84, %v85
    %v89 = vadd.f32 %v88, %v86
    %v90 = vadd.f32 %v89, %v87
    %vm91 = vcmp.ge.s32.totalorder %v59, 0
    %vm92 = vcmp.lt.s32.totalorder %v59, 4
    %vm93 = vmand %vm91, %vm92
    %v94 = vsel %vm93, 1, 0
    %v95 = vcvt.s32.f32 %v94
    %v96 = vadd.f32 %v62, %v79
    %v97 = vmul.f32 %v95, %v96
    %v98 = vsub.f32 %v97, %v90
    %v99 = vld [vmem:[#allocation2] sm:$0xff]
    %v100 = vadd.f32 %v98, 0.0
    %v101 = vadd.f32 %v99, %v100
    %102 = vst [vmem:[#allocation2] sm:$0xff] %v101
    // Predicated region
    $region22: #{tpu_custom_call.1} parent=1 // pred_check
      %p103 = pneg %p50
    $region23: #{tpu_custom_call.1} parent=1 // pred_check_branch
      %105 = sbr.rel (%p103) target = $region25
    $region24: #{tpu_custom_call.1} parent=1 // pred_region
      %v106 = vld [vmem:[#allocation2] sm:$0xff]
      %107 = vadd.xlane.f32.xlu0 %v106
      %v108 = vpop.xlane.xlu0 %107
      %v109 = vrot.slane %v108, 4
      %v110 = vadd.f32 %v108, %v109
      %v111 = vrot.slane %v110, 2
      %v112 = vadd.f32 %v110, %v111
      %v113 = vrot.slane %v112, 1
      %v114 = vadd.f32 %v112, %v113
      %s115 = vtos %v114
      %s116 = scalar_lea.smem [#allocation8], 0
      %117 = sst [smem:[%s116]] %s115
    $region25: #{tpu_custom_call.1} parent=1 // pred_fallthru
      _
    // Predicated region
    $region26: #{tpu_custom_call.1} parent=1 // pred_check
      _
    $region27: #{tpu_custom_call.1} parent=1 // pred_check_branch
      %119 = sbr.rel (0) target = $region29
    $region28: #{tpu_custom_call.1} parent=1 // pred_region
      %121 = vsyncadd [#allocation5], 0
      %s123 = sshll.u32 %s2, 4
      %s124 = int_to_ptr.hbm [resolvable:$true] %s123
      %126 = dma.smem_to_hbm [#allocation8], 16, %s124, [#allocation5]
    $region29: #{tpu_custom_call.1} parent=1 // pred_fallthru
      _
    // Predicated region
    $region30: #{tpu_custom_call.1} parent=1 // pred_check
      _
    $region31: #{tpu_custom_call.1} parent=1 // pred_check_branch
      %128 = sbr.rel (0) target = $region33
    $region32: #{tpu_custom_call.1} parent=1 // pred_region
      %130 = dma.done [#allocation5], 16
    $region33: #{tpu_custom_call.1} parent=1 // pred_fallthru
      _
    %131 = sfence
    %132 = vsyncpa [#allocation4], 1
    %133 = vsyncpa [#allocation7], 1
    %134 = vsyncpa [#allocation5], 1

</llo_original>
